<compile_context>
chip_gen: v7x
topology: tpu7x:2x2x1
jax: 0.10.0
libtpu: 0.0.40
codegen_flags: <defaults>
</compile_context>

<pallas_src>
import functools

import jax
import jax.numpy as jnp
from jax.experimental import pallas as pl
from jax.experimental.pallas import tpu as pltpu


# ----------------------------------------------------------------------------
# lin1 + ReLU (also emits the L2-normalized features for the first prop)
# ----------------------------------------------------------------------------
def lin1_kernel(x_ref, w1_ref, b1_ref, h_ref, hn_ref):
    h = jnp.dot(x_ref[...], w1_ref[...],
                preferred_element_type=jnp.float32) + b1_ref[...]
    h = jnp.maximum(h, 0.0)
    h_ref[...] = h
    # F.normalize(h, p=2, dim=-1) with eps=1e-12 (torch clamps the norm).
    nrm2 = jnp.sum(h * h, axis=-1, keepdims=True)
    hn_ref[...] = (h * jax.lax.rsqrt(jnp.maximum(nrm2, 1e-24))).astype(hn_ref.dtype)


def _lin1(x, w1t, b1, *, tq):
    n, f = x.shape
    hdim = w1t.shape[1]
    gi = n // tq
    return pl.pallas_call(
        lin1_kernel,
        out_shape=(jax.ShapeDtypeStruct((n, hdim), jnp.float32),
                   jax.ShapeDtypeStruct((n, hdim), jnp.bfloat16)),
        grid_spec=pltpu.PrefetchScalarGridSpec(
            num_scalar_prefetch=0,
            grid=(gi,),
            in_specs=[pl.BlockSpec((tq, f), lambda i: (i, 0)),
                      pl.BlockSpec((f, hdim), lambda i: (0, 0)),
                      pl.BlockSpec((1, hdim), lambda i: (0, 0))],
            out_specs=[pl.BlockSpec((tq, hdim), lambda i: (i, 0)),
                       pl.BlockSpec((tq, hdim), lambda i: (i, 0))],
        ),
        compiler_params=pltpu.CompilerParams(
            dimension_semantics=("parallel",),
            vmem_limit_bytes=32 * 1024 * 1024),
    )(x, w1t, b1)


# ----------------------------------------------------------------------------
# Flash-style AGNN propagation (online softmax over source tiles)
# ----------------------------------------------------------------------------
def _flash_update(nnz_ref, beta_ref, adj_ref, hnq_ref, hnk_ref, hk_ref,
                  m_sc, l_sc, acc_sc, *, apply_beta):
    i = pl.program_id(0)
    j = pl.program_id(1)
    n_j = pl.num_programs(1)

    @pl.when(j == 0)
    def _():
        # m starts at 0.0 (any consistent value is valid for the online
        # softmax; scores are bounded by |beta|).  With m >= 0 the masked
        # exp(-1e30 - m) underflows to exactly 0, so no second mask pass is
        # needed even for sparsely populated tiles.
        m_sc[...] = jnp.zeros_like(m_sc)
        l_sc[...] = jnp.zeros_like(l_sc)
        acc_sc[...] = jnp.zeros_like(acc_sc)

    @pl.when(nnz_ref[i * n_j + j] != 0)        # skip all-zero adjacency tiles
    def _():
        # Edge mask, hoisted: one unpack + one compare per tile.
        maskf = adj_ref[...].astype(jnp.float32)
        # Cosine similarities for this (target, source) tile: bf16 MXU, f32 acc.
        s = jax.lax.dot_general(
            hnq_ref[...], hnk_ref[...],
            dimension_numbers=(((1,), (1,)), ((), ())),
            preferred_element_type=jnp.float32)
        if apply_beta:                          # prop1 skips this (beta == 1.0)
            s = s * beta_ref[0]
        s = jnp.where(maskf > 0.0, s, -1e30)

        m_new = jnp.maximum(m_sc[...], jnp.max(s, axis=-1, keepdims=True))
        alpha = jnp.exp(m_sc[...] - m_new)
        p = jnp.exp(s - m_new)                  # masked entries underflow to 0
        l_sc[...] = alpha * l_sc[...] + jnp.sum(p, axis=-1, keepdims=True)
        acc_sc[...] = alpha * acc_sc[...] + jnp.dot(
            p.astype(jnp.bfloat16), hk_ref[...].astype(jnp.bfloat16),
            preferred_element_type=jnp.float32)
        m_sc[...] = m_new


def prop_kernel(nnz_ref, beta_ref, adj_ref, hnq_ref, hnk_ref, hk_ref,
                hout_ref, hnout_ref, m_sc, l_sc, acc_sc, *, apply_beta):
    _flash_update(nnz_ref, beta_ref, adj_ref, hnq_ref, hnk_ref, hk_ref,
                  m_sc, l_sc, acc_sc, apply_beta=apply_beta)

    @pl.when(pl.program_id(1) == pl.num_programs(1) - 1)
    def _():
        inv_l = pl.reciprocal(l_sc[...], approx=True)   # EUP
        h_out = acc_sc[...] * inv_l
        hout_ref[...] = h_out
        # Normalized copy (bf16) for the next propagation layer.
        nrm2 = jnp.sum(h_out * h_out, axis=-1, keepdims=True)
        hnout_ref[...] = (h_out * jax.lax.rsqrt(jnp.maximum(nrm2, 1e-24))
                          ).astype(hnout_ref.dtype)


def prop_lin2_kernel(nnz_ref, beta_ref, adj_ref, hnq_ref, hnk_ref, hk_ref,
                     w2_ref, b2_ref, out_ref, m_sc, l_sc, acc_sc, *, apply_beta):
    _flash_update(nnz_ref, beta_ref, adj_ref, hnq_ref, hnk_ref, hk_ref,
                  m_sc, l_sc, acc_sc, apply_beta=apply_beta)

    @pl.when(pl.program_id(1) == pl.num_programs(1) - 1)
    def _():
        inv_l = pl.reciprocal(l_sc[...], approx=True)   # EUP
        h_out = acc_sc[...] * inv_l
        # Fused lin2: lane-dense (tq, 128*k) output, padded cols sliced outside.
        out_ref[...] = jnp.dot(h_out, w2_ref[...],
                               preferred_element_type=jnp.float32) + b2_ref[...]


def _prop_scratch(tq, hdim):
    return [pltpu.VMEM((tq, 1), jnp.float32),    # m
            pltpu.VMEM((tq, 1), jnp.float32),    # l
            pltpu.VMEM((tq, hdim), jnp.float32)]  # acc


def _agnn_prop(adj_i8, nnz, h, hn, beta, *, tq, tk, apply_beta):
    n, hdim = h.shape
    gi, gj = n // tq, n // tk
    kern = functools.partial(prop_kernel, apply_beta=apply_beta)
    ce = pl.CostEstimate(flops=int(4 * n * n * hdim),
                         transcendentals=int(n * n),
                         bytes_accessed=int(n * n + 6 * n * hdim))
    return pl.pallas_call(
        kern,
        out_shape=(jax.ShapeDtypeStruct((n, hdim), jnp.float32),
                   jax.ShapeDtypeStruct((n, hdim), jnp.bfloat16)),
        grid_spec=pltpu.PrefetchScalarGridSpec(
            num_scalar_prefetch=2,                       # nnz flags, beta
            grid=(gi, gj),
            in_specs=[
                pl.BlockSpec((tq, tk), lambda i, j, nnz, beta: (i, j)),   # adj
                pl.BlockSpec((tq, hdim), lambda i, j, nnz, beta: (i, 0)),  # hn (q rows)
                pl.BlockSpec((tk, hdim), lambda i, j, nnz, beta: (j, 0)),  # hn (k rows)
                pl.BlockSpec((tk, hdim), lambda i, j, nnz, beta: (j, 0)),  # h  (values)
            ],
            out_specs=[pl.BlockSpec((tq, hdim), lambda i, j, nnz, beta: (i, 0)),
                       pl.BlockSpec((tq, hdim), lambda i, j, nnz, beta: (i, 0))],
            scratch_shapes=_prop_scratch(tq, hdim),
        ),
        compiler_params=pltpu.CompilerParams(
            dimension_semantics=("parallel", "arbitrary"),
            vmem_limit_bytes=32 * 1024 * 1024),
        cost_estimate=ce,
    )(nnz, beta, adj_i8, hn, hn, h)


def _agnn_prop_lin2(adj_i8, nnz, h, hn, beta, w2p, b2p, *, tq, tk, apply_beta):
    n, hdim = h.shape
    cp = w2p.shape[1]
    gi, gj = n // tq, n // tk
    kern = functools.partial(prop_lin2_kernel, apply_beta=apply_beta)
    ce = pl.CostEstimate(flops=int(4 * n * n * hdim + 2 * n * hdim * cp),
                         transcendentals=int(n * n),
                         bytes_accessed=int(n * n + 6 * n * hdim + n * cp * 4))
    return pl.pallas_call(
        kern,
        out_shape=jax.ShapeDtypeStruct((n, cp), jnp.float32),
        grid_spec=pltpu.PrefetchScalarGridSpec(
            num_scalar_prefetch=2,                       # nnz flags, beta
            grid=(gi, gj),
            in_specs=[
                pl.BlockSpec((tq, tk), lambda i, j, nnz, beta: (i, j)),   # adj
                pl.BlockSpec((tq, hdim), lambda i, j, nnz, beta: (i, 0)),  # hn (q rows)
                pl.BlockSpec((tk, hdim), lambda i, j, nnz, beta: (j, 0)),  # hn (k rows)
                pl.BlockSpec((tk, hdim), lambda i, j, nnz, beta: (j, 0)),  # h  (values)
                pl.BlockSpec((hdim, cp), lambda i, j, nnz, beta: (0, 0)),  # W2 (padded)
                pl.BlockSpec((1, cp), lambda i, j, nnz, beta: (0, 0)),     # b2 (padded)
            ],
            out_specs=pl.BlockSpec((tq, cp), lambda i, j, nnz, beta: (i, 0)),
            scratch_shapes=_prop_scratch(tq, hdim),
        ),
        compiler_params=pltpu.CompilerParams(
            dimension_semantics=("parallel", "arbitrary"),
            vmem_limit_bytes=32 * 1024 * 1024),
        cost_estimate=ce,
    )(nnz, beta, adj_i8, hn, hn, h, w2p, b2p)


# ----------------------------------------------------------------------------
# Full forward
# ----------------------------------------------------------------------------
def agnn_forward(x, adj_i8, w1t, b1, w2t, b2, beta1, beta2, *, tq=128, tk=128):
    """x: (N, F) f32; adj_i8: (N, N) int8 0/1 mask (self-loops included);
    w1t: (F, H), b1: (1, H); w2t: (H, C), b2: (1, C); beta1/beta2: (1,) f32.
    Tile sizes tq/tk are per-generation knobs (these defaults keep the VMEM
    footprint well under the v7x 32 MiB scoped limit with double-buffering)."""
    n = x.shape[0]
    hdim = w1t.shape[1]
    c = w2t.shape[1]
    tq = min(tq, n)
    tk = min(tk, n)
    assert n % tq == 0 and n % tk == 0, "pad N to a multiple of the tile sizes"
    gi, gj = n // tq, n // tk

    # Per-tile nonzero flags for block-sparse skipping (scalar-prefetched).
    nnz = (adj_i8.reshape(gi, tq, gj, tk).astype(jnp.int32).sum(axis=(1, 3)) > 0)
    nnz = nnz.astype(jnp.int32).reshape(-1)

    # Lane-dense lin2: pad the class dim to a multiple of 128, slice afterwards.
    cp = max(128, ((c + 127) // 128) * 128)
    w2p = jnp.zeros((hdim, cp), jnp.float32).at[:, :c].set(w2t)
    b2p = jnp.zeros((1, cp), jnp.float32).at[:, :c].set(b2)

    h0, hn0 = _lin1(x, w1t, b1, tq=tq)
    h1, hn1 = _agnn_prop(adj_i8, nnz, h0, hn0, beta1, tq=tq, tk=tk,
                         apply_beta=False)               # prop1: beta fixed 1.0
    out_p = _agnn_prop_lin2(adj_i8, nnz, h1, hn1, beta2, w2p, b2p,
                            tq=tq, tk=tk, apply_beta=True)  # prop2 + lin2 fused
    return out_p[:, :c]


def build_ring_adjacency(n):
    """Deterministic small graph: ring (i <-> i+1) plus self-loops, int8 mask."""
    idx = jnp.arange(n)
    adj = jnp.zeros((n, n), jnp.int8)
    adj = adj.at[idx, (idx + 1) % n].set(1)
    adj = adj.at[idx, (idx - 1) % n].set(1)
    adj = adj.at[idx, idx].set(1)            # add_self_loops
    return adj


if __name__ == "__main__":
    # Small shapes consistent with the module:
    #   N nodes, num_features, args.hid (chosen MXU-friendly = 128), num_classes
    N, F, H, C = 256, 32, 128, 8

    key = jax.random.PRNGKey(0)
    kx, kw1, kb1, kw2, kb2 = jax.random.split(key, 5)

    # data.x : (N, num_features)
    x = jax.random.normal(kx, (N, F), jnp.float32)
    adj = build_ring_adjacency(N)

    # Deterministic parameter init (Linear weights stored transposed).
    w1t = jax.random.normal(kw1, (F, H), jnp.float32) * (1.0 / jnp.sqrt(F))
    b1 = jax.random.normal(kb1, (1, H), jnp.float32) * 0.01
    w2t = jax.random.normal(kw2, (H, C), jnp.float32) * (1.0 / jnp.sqrt(H))
    b2 = jax.random.normal(kb2, (1, C), jnp.float32) * 0.01

    # AGNNConv betas: prop1 requires_grad=False (fixed 1.0), prop2 learnable (init 1.0).
    beta1 = jnp.ones((1,), jnp.float32)
    beta2 = jnp.ones((1,), jnp.float32)

    out = agnn_forward(x, adj, w1t, b1, w2t, b2, beta1, beta2)
    jax.block_until_ready(out)
    assert out.shape == (N, C) and bool(jnp.all(jnp.isfinite(out)))
    print("KERNEL_OK")
</pallas_src>

<mosaic_0001>
module attributes {stable_mosaic.version = 11 : i64} {
  func.func @lin1_kernel(%arg0: i32, %arg1: memref<128x32xf32, #tpu.memory_space<vmem>>, %arg2: memref<32x128xf32, #tpu.memory_space<vmem>>, %arg3: memref<1x128xf32, #tpu.memory_space<vmem>>, %arg4: memref<128x128xf32, #tpu.memory_space<vmem>>, %arg5: memref<128x128xbf16, #tpu.memory_space<vmem>>) attributes {dimension_semantics = [#tpu.dimension_semantics<parallel>], iteration_bounds = array<i64: 2>, scalar_prefetch = 0 : i64, scratch_operands = 0 : i64, tpu.core_type = #tpu.core_type<tc>, window_params = [{transform_indices = @transform_0, window_bounds = array<i64: 128, 32>}, {pipeline_mode = #tpu.pipeline_mode<synchronous>, transform_indices = @transform_1, window_bounds = array<i64: 32, 128>}, {pipeline_mode = #tpu.pipeline_mode<synchronous>, transform_indices = @transform_2, window_bounds = array<i64: 1, 128>}, {transform_indices = @transform_3, window_bounds = array<i64: 128, 128>}, {transform_indices = @transform_4, window_bounds = array<i64: 128, 128>}]} {
    %c0 = arith.constant 0 : index
    %c0_0 = arith.constant 0 : index
    %0 = vector.load %arg1[%c0, %c0_0] : memref<128x32xf32, #tpu.memory_space<vmem>>, vector<128x32xf32>
    %c0_1 = arith.constant 0 : index
    %c0_2 = arith.constant 0 : index
    %1 = vector.load %arg2[%c0_1, %c0_2] : memref<32x128xf32, #tpu.memory_space<vmem>>, vector<32x128xf32>
    %cst = arith.constant dense<0.000000e+00> : vector<128x128xf32>
    %2 = tpu.matmul %0, %1, %cst {dimension_numbers = #tpu.dot_dimension_numbers<[1], [0], [0], [1], [0, 0, 1, 1], [], []>} : vector<128x32xf32>, vector<32x128xf32>, vector<128x128xf32> -> vector<128x128xf32>
    %c0_3 = arith.constant 0 : index
    %c0_4 = arith.constant 0 : index
    %3 = vector.load %arg3[%c0_3, %c0_4] : memref<1x128xf32, #tpu.memory_space<vmem>>, vector<1x128xf32>
    %4 = vector.broadcast %3 : vector<1x128xf32> to vector<128x128xf32>
    %5 = arith.addf %2, %4 : vector<128x128xf32>
    %cst_5 = arith.constant 0.000000e+00 : f32
    %6 = vector.broadcast %cst_5 : f32 to vector<128x128xf32>
    %7 = arith.maximumf %5, %6 : vector<128x128xf32>
    %c0_6 = arith.constant 0 : index
    %c0_7 = arith.constant 0 : index
    %8 = vector.load %arg4[%c0_6, %c0_7] : memref<128x128xf32, #tpu.memory_space<vmem>>, vector<128x128xf32>
    tpu.vector_store %arg4[%c0_6, %c0_7], %7 {strides = array<i32>} : memref<128x128xf32, #tpu.memory_space<vmem>>, vector<128x128xf32>,
    %9 = arith.mulf %7, %7 : vector<128x128xf32>
    %cst_8 = arith.constant dense<0.000000e+00> : vector<128xf32>
    %10 = vector.multi_reduction <add>, %9, %cst_8 [1] : vector<128x128xf32> to vector<128xf32>
    %11 = vector.shape_cast %10 : vector<128xf32> to vector<128x1xf32>
    %cst_9 = arith.constant 1.000000e-24 : f32
    %12 = vector.broadcast %cst_9 : f32 to vector<128x1xf32>
    %13 = arith.maximumf %11, %12 : vector<128x1xf32>
    %14 = math.rsqrt %13 : vector<128x1xf32>
    %15 = vector.broadcast %14 : vector<128x1xf32> to vector<128x128xf32>
    %16 = arith.mulf %7, %15 : vector<128x128xf32>
    %17 = arith.truncf %16 : vector<128x128xf32> to vector<128x128xbf16>
    %c0_10 = arith.constant 0 : index
    %c0_11 = arith.constant 0 : index
    %18 = vector.load %arg5[%c0_10, %c0_11] : memref<128x128xbf16, #tpu.memory_space<vmem>>, vector<128x128xbf16>
    tpu.vector_store %arg5[%c0_10, %c0_11], %17 {strides = array<i32>} : memref<128x128xbf16, #tpu.memory_space<vmem>>, vector<128x128xbf16>,
    return
  }
  func.func @transform_0(%arg0: i32) -> (i32, i32) {
    %c0_i32 = arith.constant 0 : i32
    %c0_i32_0 = arith.constant 0 : i32
    return %arg0, %c0_i32 : i32, i32
  }
  func.func @transform_1(%arg0: i32) -> (i32, i32) {
    %c0_i32 = arith.constant 0 : i32
    %c0_i32_0 = arith.constant 0 : i32
    %c0_i32_1 = arith.constant 0 : i32
    return %c0_i32, %c0_i32_0 : i32, i32
  }
  func.func @transform_2(%arg0: i32) -> (i32, i32) {
    %c0_i32 = arith.constant 0 : i32
    %c0_i32_0 = arith.constant 0 : i32
    %c0_i32_1 = arith.constant 0 : i32
    return %c0_i32, %c0_i32_0 : i32, i32
  }
  func.func @transform_3(%arg0: i32) -> (i32, i32) {
    %c0_i32 = arith.constant 0 : i32
    %c0_i32_0 = arith.constant 0 : i32
    return %arg0, %c0_i32 : i32, i32
  }
  func.func @transform_4(%arg0: i32) -> (i32, i32) {
    %c0_i32 = arith.constant 0 : i32
    %c0_i32_0 = arith.constant 0 : i32
    return %arg0, %c0_i32 : i32, i32
  }
}

</mosaic_0001>

<llo_original>
// kernel: tpu_custom_call.1
$region0: #{tpu_custom_call.1}
  #allocation0 [shape = 'u32[]', space=smem, size = 0x4, offset = 0x4, fixed_abs, tag = 'smem constant byte address 0x4 - core index']
  #allocation1 [shape = 'u32[144,128]{1,0:T(1,128)}', space=vmem, size = 0x12000, scoped, tag = 'internal scratch']
  %s0 = inlined_call_operand.vmem [shape: f32[256,32], index: 0, kind: input, shape index: {}]
  %s1 = inlined_call_operand.vmem [shape: f32[32,128], index: 1, kind: input, shape index: {}]
  %s2 = inlined_call_operand.vmem [shape: f32[1,128], index: 2, kind: input, shape index: {}]
  %s3 = inlined_call_operand.hbm [shape: f32[256,128], index: 3, kind: output, shape index: {0}]
  %s4 = inlined_call_operand.hbm [shape: bf16[256,128], index: 4, kind: output, shape index: {1}]
  %5 = xla_tuple %s3, %s4
  %s6 = sld [smem:[#allocation0]]
  $region53: #{tpu_custom_call.1} parent=0
    _
  %s8 = ssub.s32 1, %s6
  %s9 = scalar_select 0, %s8, %s6
  $region1: #{tpu_custom_call.1} parent=0
    #allocation2 [shape = 'u8[131072]{0}', space=vmem, size = 0x20000, scoped, tag = 'output window, operand 0']
    #allocation3 [shape = 's32[2]{0}', space=sflag, size = 0x8, scoped, tag = 'scoped memory for tpu_custom_call.1']
    #allocation4 [shape = 'u8[65536]{0}', space=vmem, size = 0x10000, scoped, tag = 'output window, operand 1']
    #allocation5 [shape = 's32[2]{0}', space=sflag, size = 0x8, scoped, tag = 'scoped memory for tpu_custom_call.1']
    %10 = vsyncpa [#allocation3], 0
    %s11 = scalar_lea.sflag [#allocation3], 1
    %12 = vsyncpa %s11, 0
    %13 = vsyncpa [#allocation5], 0
    %s14 = scalar_lea.sflag [#allocation5], 1
    %15 = vsyncpa %s14, 0
    loop: start=0, step=1, limit=4
    $region2: #{tpu_custom_call.1} parent=1 // loop_pre_header
      _
    $region3: #{tpu_custom_call.1} parent=1 // loop_header
      %s17 = sphi 0, %s21
      %p18 = scmp.ge.s32.totalorder %s17, 4
      %s27 = sphi 0, %s29
      %s30 = sphi 0, %s27
      %s31 = sphi 0, %s30
      %s47 = sphi 0, %s31
      %s51 = sphi 0, %s51
      %s53 = sphi 0, %s51
      %s54 = sphi 0, %s53
      %s68 = sphi 0, %s54
      %s72 = sphi 0, %s72
      %s74 = sphi 0, %s72
      %s75 = sphi 0, %s74
      %s89 = sphi 0, %s75
      %s95 = sphi 0, %s97
      %s98 = sphi 0, %s95
      %s99 = sphi 0, %s98
      %s115 = sphi 0, %s99
      %s121 = sphi 0, %s123
      %s124 = sphi 0, %s121
      %s125 = sphi 0, %s124
      %s141 = sphi 0, %s125
    $region4: #{tpu_custom_call.1} parent=1 // loop_header_branch
      %20 = sbr.rel (%p18) target = $region8
    $region5: #{tpu_custom_call.1} parent=1 // loop_body
      %s22 = ssub.s32 %s17, 1
      %s23 = ssub.s32 %s17, 2
      %s24 = sadd.s32 %s17, 1
      %s25 = ssub.s32 %s17, %s24
      %p26 = scmp.eq.s32.totalorder %s25, 0
      %s28 = sadd.s32 %s27, 1
      %s29 = scalar_select %p26, %s27, %s28
      %p32 = pneg %p26
      %p33 = scmp.eq.s32.totalorder %s17, 1
      %p34 = por %p32, %p33
      %p35 = scmp.ne.s32.totalorder %s27, %s30
      %p36 = scmp.eq.s32.totalorder %s17, 0
      %p37 = por %p35, %p36
      %p38 = scmp.ne.s32.totalorder %s27, %s30
      %p39 = scmp.eq.s32.totalorder %s22, 1
      %p40 = por %p38, %p39
      %p41 = scmp.ne.s32.totalorder %s30, %s31
      %p42 = scmp.eq.s32.totalorder %s22, 0
      %p43 = por %p41, %p42
      %p44 = scmp.ne.s32.totalorder %s30, %s31
      %p45 = scmp.eq.s32.totalorder %s23, 1
      %p46 = por %p44, %p45
      %p48 = scmp.ne.s32.totalorder %s31, %s47
      %p49 = scmp.eq.s32.totalorder %s23, 0
      %p50 = por %p48, %p49
      %s52 = sadd.s32 %s51, 1
      %p55 = scmp.eq.s32.totalorder %s17, 1
      %p56 = scmp.ne.s32.totalorder %s51, %s53
      %p57 = scmp.eq.s32.totalorder %s17, 0
      %p58 = por %p56, %p57
      %p59 = scmp.ne.s32.totalorder %s51, %s53
      %p60 = scmp.eq.s32.totalorder %s22, 1
      %p61 = por %p59, %p60
      %p62 = scmp.ne.s32.totalorder %s53, %s54
      %p63 = scmp.eq.s32.totalorder %s22, 0
      %p64 = por %p62, %p63
      %p65 = scmp.ne.s32.totalorder %s53, %s54
      %p66 = scmp.eq.s32.totalorder %s23, 1
      %p67 = por %p65, %p66
      %p69 = scmp.ne.s32.totalorder %s54, %s68
      %p70 = scmp.eq.s32.totalorder %s23, 0
      %p71 = por %p69, %p70
      %s73 = sadd.s32 %s72, 1
      %p76 = scmp.eq.s32.totalorder %s17, 1
      %p77 = scmp.ne.s32.totalorder %s72, %s74
      %p78 = scmp.eq.s32.totalorder %s17, 0
      %p79 = por %p77, %p78
      %p80 = scmp.ne.s32.totalorder %s72, %s74
      %p81 = scmp.eq.s32.totalorder %s22, 1
      %p82 = por %p80, %p81
      %p83 = scmp.ne.s32.totalorder %s74, %s75
      %p84 = scmp.eq.s32.totalorder %s22, 0
      %p85 = por %p83, %p84
      %p86 = scmp.ne.s32.totalorder %s74, %s75
      %p87 = scmp.eq.s32.totalorder %s23, 1
      %p88 = por %p86, %p87
      %p90 = scmp.ne.s32.totalorder %s75, %s89
      %p91 = scmp.eq.s32.totalorder %s23, 0
      %p92 = por %p90, %p91
      %s93 = ssub.s32 %s17, %s24
      %p94 = scmp.eq.s32.totalorder %s93, 0
      %s96 = sadd.s32 %s95, 1
      %s97 = scalar_select %p94, %s95, %s96
      %p100 = pneg %p94
      %p101 = scmp.eq.s32.totalorder %s17, 1
      %p102 = por %p100, %p101
      %p103 = scmp.ne.s32.totalorder %s95, %s98
      %p104 = scmp.eq.s32.totalorder %s17, 0
      %p105 = por %p103, %p104
      %p106 = scmp.ne.s32.totalorder %s95, %s98
      %p107 = scmp.eq.s32.totalorder %s22, 1
      %p108 = por %p106, %p107
      %p109 = scmp.ne.s32.totalorder %s98, %s99
      %p110 = scmp.eq.s32.totalorder %s22, 0
      %p111 = por %p109, %p110
      %p112 = scmp.ne.s32.totalorder %s98, %s99
      %p113 = scmp.eq.s32.totalorder %s23, 1
      %p114 = por %p112, %p113
      %p116 = scmp.ne.s32.totalorder %s99, %s115
      %p117 = scmp.eq.s32.totalorder %s23, 0
      %p118 = por %p116, %p117
      %s119 = ssub.s32 %s17, %s24
      %p120 = scmp.eq.s32.totalorder %s119, 0
      %s122 = sadd.s32 %s121, 1
      %s123 = scalar_select %p120, %s121, %s122
      %p126 = pneg %p120
      %p127 = scmp.eq.s32.totalorder %s17, 1
      %p128 = por %p126, %p127
      %p129 = scmp.ne.s32.totalorder %s121, %s124
      %p130 = scmp.eq.s32.totalorder %s17, 0
      %p131 = por %p129, %p130
      %p132 = scmp.ne.s32.totalorder %s121, %s124
      %p133 = scmp.eq.s32.totalorder %s22, 1
      %p134 = por %p132, %p133
      %p135 = scmp.ne.s32.totalorder %s124, %s125
      %p136 = scmp.eq.s32.totalorder %s22, 0
      %p137 = por %p135, %p136
      %p138 = scmp.ne.s32.totalorder %s124, %s125
      %p139 = scmp.eq.s32.totalorder %s23, 1
      %p140 = por %p138, %p139
      %p142 = scmp.ne.s32.totalorder %s125, %s141
      %p143 = scmp.eq.s32.totalorder %s23, 0
      %p144 = por %p142, %p143
      %p145 = scmp.le.s32.totalorder 1, %s17
      %p146 = scmp.lt.s32.totalorder %s17, 3
      %p147 = pnand %p145, %p146
      %p148 = pneg %p147
      // Predicated region
      $region9: #{tpu_custom_call.1} parent=5 // pred_check
        _
      $region10: #{tpu_custom_call.1} parent=5 // pred_check_branch
        %150 = sbr.rel (%p147) target = $region12
      $region11: #{tpu_custom_call.1} parent=5 // pred_region
        %s151 = ssub.s32 %s17, 1
        // Predicated region
        $region13: #{tpu_custom_call.1} parent=11 // pred_check
          %p152 = pneg %p64
        $region14: #{tpu_custom_call.1} parent=11 // pred_check_branch
          %154 = sbr.rel (%p152) target = $region16
        $region15: #{tpu_custom_call.1} parent=11 // pred_region
          _
        $region16: #{tpu_custom_call.1} parent=11 // pred_fallthru
          _
        // Predicated region
        $region17: #{tpu_custom_call.1} parent=11 // pred_check
          %p155 = pneg %p85
        $region18: #{tpu_custom_call.1} parent=11 // pred_check_branch
          %157 = sbr.rel (%p155) target = $region20
        $region19: #{tpu_custom_call.1} parent=11 // pred_region
          _
        $region20: #{tpu_custom_call.1} parent=11 // pred_fallthru
          _
      $region12: #{tpu_custom_call.1} parent=5 // pred_fallthru
        _
      %p158 = scmp.lt.s32.totalorder %s17, 2
      // Predicated region
      $region21: #{tpu_custom_call.1} parent=5 // pred_check
        %p159 = pneg %p158
      $region22: #{tpu_custom_call.1} parent=5 // pred_check_branch
        %161 = sbr.rel (%p159) target = $region24
      $region23: #{tpu_custom_call.1} parent=5 // pred_region
        // Predicated region
        $region25: #{tpu_custom_call.1} parent=23 // pred_check
          %p162 = pneg %p37
        $region26: #{tpu_custom_call.1} parent=23 // pred_check_branch
          %164 = sbr.rel (%p162) target = $region28
        $region27: #{tpu_custom_call.1} parent=23 // pred_region
          %s165 = smul.u32 16, %s17
          %p166 = scmp.lt.s32.totalorder %s165, 31
          %s167 = scalar_select %p166, %s165, 31
          %s168 = smul.addr %s167, 8
          %s169 = scalar_lea.vmem %s0, %s168
          %s170 = smul.u32 16, %s17
        $region28: #{tpu_custom_call.1} parent=23 // pred_fallthru
          _
      $region24: #{tpu_custom_call.1} parent=5 // pred_fallthru
        _
      %p171 = scmp.le.s32.totalorder 1, %s17
      %p172 = scmp.lt.s32.totalorder %s17, 3
      %p173 = pnand %p171, %p172
      %p174 = pneg %p173
      // Predicated region
      $region29: #{tpu_custom_call.1} parent=5 // pred_check
        _
      $region30: #{tpu_custom_call.1} parent=5 // pred_check_branch
        %176 = sbr.rel (%p173) target = $region32
      $region31: #{tpu_custom_call.1} parent=5 // pred_region
        %s177 = ssub.s32 %s17, 1
        %s178 = smul.u32 16, %s22
        %p179 = scmp.lt.s32.totalorder %s178, 31
        %s180 = scalar_select %p179, %s178, 31
        %s181 = smul.addr %s180, 8
        %s182 = scalar_lea.vmem %s0, %s181
        %p183 = pneg %p43
        %p184 = pneg %p40
        %p185 = pneg %p64
        %p186 = pneg %p61
        %p187 = pneg %p85
        %p188 = pneg %p82
        %p189 = pneg %p111
        %p190 = pneg %p108
        %s191 = sand.u32 %s98, 1
        %s192 = scalar_lea.sflag [#allocation3], %s191
        %s193 = sand.u32 %s98, 1
        %s194 = smul.addr %s193, 128
        %s195 = scalar_lea.vmem [#allocation2], %s194
        %p196 = pneg %p137
        %p197 = pneg %p134
        %s198 = sand.u32 %s124, 1
        %s199 = scalar_lea.sflag [#allocation5], %s198
        %s200 = sand.u32 %s124, 1
        %s201 = smul.addr %s200, 64
        %s202 = scalar_lea.vmem [#allocation4], %s201
        %s203 = smul.u32 16, %s22
        %p204 = scmp.lt.s32.totalorder %s203, 31
        %s205 = scalar_select %p204, %s203, 31
        %s206 = smul.addr %s205, 8
        %s207 = scalar_lea.vmem %s0, %s206
        %s208 = smul.u32 16, %s22
        %s209 = smul.u32 16, %s22
        %s210 = smul.u32 16, %s22
        %v211 = vld [vmem:[%s207] sm:$0xff]
        %v212 = vld [vmem:[%s207 + $0x8] sm:$0xff]
        %v213 = vld [vmem:[%s207 + $0x10] sm:$0xff]
        %v214 = vld [vmem:[%s207 + $0x18] sm:$0xff]
        %v215 = vld [vmem:[%s207 + $0x20] sm:$0xff]
        %v216 = vld [vmem:[%s207 + $0x28] sm:$0xff]
        %v217 = vld [vmem:[%s207 + $0x30] sm:$0xff]
        %v218 = vld [vmem:[%s207 + $0x38] sm:$0xff]
        %v219 = vld [vmem:[%s207 + $0x40] sm:$0xff]
        %v220 = vld [vmem:[%s207 + $0x48] sm:$0xff]
        %v221 = vld [vmem:[%s207 + $0x50] sm:$0xff]
        %v222 = vld [vmem:[%s207 + $0x58] sm:$0xff]
        %v223 = vld [vmem:[%s207 + $0x60] sm:$0xff]
        %v224 = vld [vmem:[%s207 + $0x68] sm:$0xff]
        %v225 = vld [vmem:[%s207 + $0x70] sm:$0xff]
        %v226 = vld [vmem:[%s207 + $0x78] sm:$0xff]
        %v227 = vld [vmem:[%s1] sm:$0xff]
        %v228 = vld [vmem:[%s1 + $0x8] sm:$0xff]
        %v229 = vld [vmem:[%s1 + $0x10] sm:$0xff]
        %v230 = vld [vmem:[%s1 + $0x18] sm:$0xff]
        %v231 = vld [vmem:[%s2] sm:$0x1]
        %v233 = vlaneseq
        %v234 = vshrl.u32 %v233, 7
        %v235 = vsub.s32 0, %v234
        %v236 = vrot.slane %v231, %v235
        %vm238 = vcmask 261120
        %v240 = vsel %vm238, %v211, 0
        %v243 = vsel %vm238, %v212, 0
        %v246 = vsel %vm238, %v213, 0
        %v249 = vsel %vm238, %v214, 0
        %v252 = vsel %vm238, %v215, 0
        %v255 = vsel %vm238, %v216, 0
        %v258 = vsel %vm238, %v217, 0
        %v261 = vsel %vm238, %v218, 0
        %v264 = vsel %vm238, %v219, 0
        %v267 = vsel %vm238, %v220, 0
        %v270 = vsel %vm238, %v221, 0
        %v273 = vsel %vm238, %v222, 0
        %v276 = vsel %vm238, %v223, 0
        %v279 = vsel %vm238, %v224, 0
        %v282 = vsel %vm238, %v225, 0
        %v285 = vsel %vm238, %v226, 0
        %287 = vmatprep.subr.mxu0 0.0
        %288 = vmatpush1.msra.mxu0 %v227
        %289 = vmatprep.subr.mxu0 0.0
        %290 = vmatpush1.msra.mxu0 %v228
        %291 = vmatprep.subr.mxu0 0.0
        %292 = vmatpush1.msra.mxu0 %v229
        %293 = vmatprep.subr.mxu0 0.0
        %294 = vmatpush1.msra.mxu0 %v230
        %295 = vmatprep.subr.mxu0 0.0
        %296 = vmatpush1.msra.mxu0 0.0
        %297 = vmatprep.subr.mxu0 0.0
        %298 = vmatpush1.msra.mxu0 0.0
        %299 = vmatprep.subr.mxu0 0.0
        %300 = vmatpush1.msra.mxu0 0.0
        %301 = vmatprep.subr.mxu0 0.0
        %302 = vmatpush1.msra.mxu0 0.0
        %303 = vmatprep.subr.mxu0 0.0
        %304 = vmatpush1.msra.mxu0 0.0
        %305 = vmatprep.subr.mxu0 0.0
        %306 = vmatpush1.msra.mxu0 0.0
        %307 = vmatprep.subr.mxu0 0.0
        %308 = vmatpush1.msra.mxu0 0.0
        %309 = vmatprep.subr.mxu0 0.0
        %310 = vmatpush1.msra.mxu0 0.0
        %311 = vmatprep.subr.mxu0 0.0
        %312 = vmatpush1.msra.mxu0 0.0
        %313 = vmatprep.subr.mxu0 0.0
        %314 = vmatpush1.msra.mxu0 0.0
        %315 = vmatprep.subr.mxu0 0.0
        %316 = vmatpush1.msra.mxu0 0.0
        %317 = vmatprep.subr.mxu0 0.0
        %318 = vmatpush1.msra.mxu0 0.0
        %319 = vmatprep.subr.mxu0 0.0
        %320 = vmatpush1.msra.mxu0 0.0
        %321 = vmatprep.subr.mxu0 0.0
        %322 = vmatpush1.msra.mxu0 0.0
        %323 = vmatprep.subr.mxu0 0.0
        %324 = vmatpush1.msra.mxu0 0.0
        %325 = vmatprep.subr.mxu0 0.0
        %326 = vmatpush1.msra.mxu0 0.0
        %327 = vmatprep.subr.mxu0 0.0
        %328 = vmatpush1.msra.mxu0 0.0
        %329 = vmatprep.subr.mxu0 0.0
        %330 = vmatpush1.msra.mxu0 0.0
        %331 = vmatprep.subr.mxu0 0.0
        %332 = vmatpush1.msra.mxu0 0.0
        %333 = vmatprep.subr.mxu0 0.0
        %334 = vmatpush1.msra.mxu0 0.0
        %335 = vmatprep.subr.mxu0 0.0
        %336 = vmatpush1.msra.mxu0 0.0
        %337 = vmatprep.subr.mxu0 0.0
        %338 = vmatpush1.msra.mxu0 0.0
        %339 = vmatprep.subr.mxu0 0.0
        %340 = vmatpush1.msra.mxu0 0.0
        %341 = vmatprep.subr.mxu0 0.0
        %342 = vmatpush1.msra.mxu0 0.0
        %343 = vmatprep.subr.mxu0 0.0
        %344 = vmatpush1.msra.mxu0 0.0
        %345 = vmatprep.subr.mxu0 0.0
        %346 = vmatpush1.msra.mxu0 0.0
        %347 = vmatprep.subr.mxu0 0.0
        %348 = vmatpush1.msra.mxu0 0.0
        %349 = vmatprep.subr.mxu0 0.0
        %350 = vmatpush1.msra.mxu0 0.0
        %351 = vmatprep.mubr.f32.mxu0 0.0
        %352 = vmatmul.mubr.f32.gmra.mrb[0].mxu0 %v240
        %v353 = vpop.f32.mrb[0].mxu0
        %v354 = vadd.f32 %v236, %v353
        %v355 = vpop.f32.mrb[0].mxu0
        %356 = vmatprep.mubr.f32.mxu0 0.0
        %357 = vmatmul.mubr.f32.gmra.mrb[0].mxu0 %v243
        %v358 = vpop.f32.mrb[0].mxu0
        %v359 = vadd.f32 %v236, %v358
        %v360 = vpop.f32.mrb[0].mxu0
        %361 = vmatprep.mubr.f32.mxu0 0.0
        %362 = vmatmul.mubr.f32.gmra.mrb[0].mxu0 %v246
        %v363 = vpop.f32.mrb[0].mxu0
        %v364 = vadd.f32 %v236, %v363
        %v365 = vpop.f32.mrb[0].mxu0
        %366 = vmatprep.mubr.f32.mxu0 0.0
        %367 = vmatmul.mubr.f32.gmra.mrb[0].mxu0 %v249
        %v368 = vpop.f32.mrb[0].mxu0
        %v369 = vadd.f32 %v236, %v368
        %v370 = vpop.f32.mrb[0].mxu0
        %371 = vmatprep.mubr.f32.mxu0 0.0
        %372 = vmatmul.mubr.f32.gmra.mrb[0].mxu0 %v252
        %v373 = vpop.f32.mrb[0].mxu0
        %v374 = vadd.f32 %v236, %v373
        %v375 = vpop.f32.mrb[0].mxu0
        %376 = vmatprep.mubr.f32.mxu0 0.0
        %377 = vmatmul.mubr.f32.gmra.mrb[0].mxu0 %v255
        %v378 = vpop.f32.mrb[0].mxu0
        %v379 = vadd.f32 %v236, %v378
        %v380 = vpop.f32.mrb[0].mxu0
        %381 = vmatprep.mubr.f32.mxu0 0.0
        %382 = vmatmul.mubr.f32.gmra.mrb[0].mxu0 %v258
        %v383 = vpop.f32.mrb[0].mxu0
        %v384 = vadd.f32 %v236, %v383
        %v385 = vpop.f32.mrb[0].mxu0
        %386 = vmatprep.mubr.f32.mxu0 0.0
        %387 = vmatmul.mubr.f32.gmra.mrb[0].mxu0 %v261
        %v388 = vpop.f32.mrb[0].mxu0
        %v389 = vadd.f32 %v236, %v388
        %v390 = vpop.f32.mrb[0].mxu0
        %391 = vmatprep.mubr.f32.mxu0 0.0
        %392 = vmatmul.mubr.f32.gmra.mrb[0].mxu0 %v264
        %v393 = vpop.f32.mrb[0].mxu0
        %v394 = vadd.f32 %v236, %v393
        %v395 = vpop.f32.mrb[0].mxu0
        %396 = vmatprep.mubr.f32.mxu0 0.0
        %397 = vmatmul.mubr.f32.gmra.mrb[0].mxu0 %v267
        %v398 = vpop.f32.mrb[0].mxu0
        %v399 = vadd.f32 %v236, %v398
        %v400 = vpop.f32.mrb[0].mxu0
        %401 = vmatprep.mubr.f32.mxu0 0.0
        %402 = vmatmul.mubr.f32.gmra.mrb[0].mxu0 %v270
        %v403 = vpop.f32.mrb[0].mxu0
        %v404 = vadd.f32 %v236, %v403
        %v405 = vpop.f32.mrb[0].mxu0
        %406 = vmatprep.mubr.f32.mxu0 0.0
        %407 = vmatmul.mubr.f32.gmra.mrb[0].mxu0 %v273
        %v408 = vpop.f32.mrb[0].mxu0
        %v409 = vadd.f32 %v236, %v408
        %v410 = vpop.f32.mrb[0].mxu0
        %411 = vmatprep.mubr.f32.mxu0 0.0
        %412 = vmatmul.mubr.f32.gmra.mrb[0].mxu0 %v276
        %v413 = vpop.f32.mrb[0].mxu0
        %v414 = vadd.f32 %v236, %v413
        %v415 = vpop.f32.mrb[0].mxu0
        %416 = vmatprep.mubr.f32.mxu0 0.0
        %417 = vmatmul.mubr.f32.gmra.mrb[0].mxu0 %v279
        %v418 = vpop.f32.mrb[0].mxu0
        %v419 = vadd.f32 %v236, %v418
        %v420 = vpop.f32.mrb[0].mxu0
        %421 = vmatprep.mubr.f32.mxu0 0.0
        %422 = vmatmul.mubr.f32.gmra.mrb[0].mxu0 %v282
        %v423 = vpop.f32.mrb[0].mxu0
        %v424 = vadd.f32 %v236, %v423
        %v425 = vpop.f32.mrb[0].mxu0
        %426 = vmatprep.mubr.f32.mxu0 0.0
        %427 = vmatmul.mubr.f32.gmra.mrb[0].mxu0 %v285
        %v428 = vpop.f32.mrb[0].mxu0
        %v429 = vadd.f32 %v236, %v428
        %v430 = vpop.f32.mrb[0].mxu0
        %431 = vdwg.mxu0
        %v432 = vmax.f32 %v354, 0.0
        %v433 = vmax.f32 %v359, 0.0
        %v434 = vmax.f32 %v364, 0.0
        %v435 = vmax.f32 %v369, 0.0
        %v436 = vmax.f32 %v374, 0.0
        %v437 = vmax.f32 %v379, 0.0
        %v438 = vmax.f32 %v384, 0.0
        %v439 = vmax.f32 %v389, 0.0
        %v440 = vmax.f32 %v394, 0.0
        %v441 = vmax.f32 %v399, 0.0
        %v442 = vmax.f32 %v404, 0.0
        %v443 = vmax.f32 %v409, 0.0
        %v444 = vmax.f32 %v414, 0.0
        %v445 = vmax.f32 %v419, 0.0
        %v446 = vmax.f32 %v424, 0.0
        %v447 = vmax.f32 %v429, 0.0
        %448 = vst [vmem:[%s195] sm:$0xff] %v432
        %449 = vst [vmem:[%s195 + $0x8] sm:$0xff] %v433
        %450 = vst [vmem:[%s195 + $0x10] sm:$0xff] %v434
        %451 = vst [vmem:[%s195 + $0x18] sm:$0xff] %v435
        %452 = vst [vmem:[%s195 + $0x20] sm:$0xff] %v436
        %453 = vst [vmem:[%s195 + $0x28] sm:$0xff] %v437
        %454 = vst [vmem:[%s195 + $0x30] sm:$0xff] %v438
        %455 = vst [vmem:[%s195 + $0x38] sm:$0xff] %v439
        %456 = vst [vmem:[%s195 + $0x40] sm:$0xff] %v440
        %457 = vst [vmem:[%s195 + $0x48] sm:$0xff] %v441
        %458 = vst [vmem:[%s195 + $0x50] sm:$0xff] %v442
        %459 = vst [vmem:[%s195 + $0x58] sm:$0xff] %v443
        %460 = vst [vmem:[%s195 + $0x60] sm:$0xff] %v444
        %461 = vst [vmem:[%s195 + $0x68] sm:$0xff] %v445
        %462 = vst [vmem:[%s195 + $0x70] sm:$0xff] %v446
        %463 = vst [vmem:[%s195 + $0x78] sm:$0xff] %v447
        %v464 = vmul.f32 %v432, %v432
        %v465 = vmul.f32 %v433, %v433
        %v466 = vmul.f32 %v434, %v434
        %v467 = vmul.f32 %v435, %v435
        %v468 = vmul.f32 %v436, %v436
        %v469 = vmul.f32 %v437, %v437
        %v470 = vmul.f32 %v438, %v438
        %v471 = vmul.f32 %v439, %v439
        %v472 = vmul.f32 %v440, %v440
        %v473 = vmul.f32 %v441, %v441
        %v474 = vmul.f32 %v442, %v442
        %v475 = vmul.f32 %v443, %v443
        %v476 = vmul.f32 %v444, %v444
        %v477 = vmul.f32 %v445, %v445
        %v478 = vmul.f32 %v446, %v446
        %v479 = vmul.f32 %v447, %v447
        %480 = vadd.xlane.f32.xlu0 %v464
        %v481 = vpop.xlane.xlu0 %480
        %482 = vadd.xlane.f32.xlu0 %v465
        %v483 = vpop.xlane.xlu0 %482
        %484 = vadd.xlane.f32.xlu0 %v466
        %v485 = vpop.xlane.xlu0 %484
        %486 = vadd.xlane.f32.xlu0 %v467
        %v487 = vpop.xlane.xlu0 %486
        %488 = vadd.xlane.f32.xlu0 %v468
        %v489 = vpop.xlane.xlu0 %488
        %490 = vadd.xlane.f32.xlu0 %v469
        %v491 = vpop.xlane.xlu0 %490
        %492 = vadd.xlane.f32.xlu0 %v470
        %v493 = vpop.xlane.xlu0 %492
        %494 = vadd.xlane.f32.xlu0 %v471
        %v495 = vpop.xlane.xlu0 %494
        %496 = vadd.xlane.f32.xlu0 %v472
        %v497 = vpop.xlane.xlu0 %496
        %498 = vadd.xlane.f32.xlu0 %v473
        %v499 = vpop.xlane.xlu0 %498
        %500 = vadd.xlane.f32.xlu0 %v474
        %v501 = vpop.xlane.xlu0 %500
        %502 = vadd.xlane.f32.xlu0 %v475
        %v503 = vpop.xlane.xlu0 %502
        %504 = vadd.xlane.f32.xlu0 %v476
        %v505 = vpop.xlane.xlu0 %504
        %506 = vadd.xlane.f32.xlu0 %v477
        %v507 = vpop.xlane.xlu0 %506
        %508 = vadd.xlane.f32.xlu0 %v478
        %v509 = vpop.xlane.xlu0 %508
        %510 = vadd.xlane.f32.xlu0 %v479
        %v511 = vpop.xlane.xlu0 %510
        %v512 = vmax.f32 %v481, 1e-24
        %v513 = vmax.f32 %v483, 1e-24
        %v514 = vmax.f32 %v485, 1e-24
        %v515 = vmax.f32 %v487, 1e-24
        %v516 = vmax.f32 %v489, 1e-24
        %v517 = vmax.f32 %v491, 1e-24
        %v518 = vmax.f32 %v493, 1e-24
        %v519 = vmax.f32 %v495, 1e-24
        %v520 = vmax.f32 %v497, 1e-24
        %v521 = vmax.f32 %v499, 1e-24
        %v522 = vmax.f32 %v501, 1e-24
        %v523 = vmax.f32 %v503, 1e-24
        %v524 = vmax.f32 %v505, 1e-24
        %v525 = vmax.f32 %v507, 1e-24
        %v526 = vmax.f32 %v509, 1e-24
        %v527 = vmax.f32 %v511, 1e-24
        %v528 = vrsqrt.pop %v512
        %v529 = vrsqrt.pop %v513
        %v530 = vrsqrt.pop %v514
        %v531 = vrsqrt.pop %v515
        %v532 = vrsqrt.pop %v516
        %v533 = vrsqrt.pop %v517
        %v534 = vrsqrt.pop %v518
        %v535 = vrsqrt.pop %v519
        %v536 = vrsqrt.pop %v520
        %v537 = vrsqrt.pop %v521
        %v538 = vrsqrt.pop %v522
        %v539 = vrsqrt.pop %v523
        %v540 = vrsqrt.pop %v524
        %v541 = vrsqrt.pop %v525
        %v542 = vrsqrt.pop %v526
        %v543 = vrsqrt.pop %v527
        %v544 = vmul.f32 %v432, %v528
        %v545 = vmul.f32 %v433, %v529
        %v546 = vmul.f32 %v434, %v530
        %v547 = vmul.f32 %v435, %v531
        %v548 = vmul.f32 %v436, %v532
        %v549 = vmul.f32 %v437, %v533
        %v550 = vmul.f32 %v438, %v534
        %v551 = vmul.f32 %v439, %v535
        %v552 = vmul.f32 %v440, %v536
        %v553 = vmul.f32 %v441, %v537
        %v554 = vmul.f32 %v442, %v538
        %v555 = vmul.f32 %v443, %v539
        %v556 = vmul.f32 %v444, %v540
        %v557 = vmul.f32 %v445, %v541
        %v558 = vmul.f32 %v446, %v542
        %v559 = vmul.f32 %v447, %v543
        %v560 = vpack.c.bf16 %v545, %v544
        %v561 = vpack.c.bf16 %v547, %v546
        %v562 = vpack.c.bf16 %v549, %v548
        %v563 = vpack.c.bf16 %v551, %v550
        %v564 = vpack.c.bf16 %v553, %v552
        %v565 = vpack.c.bf16 %v555, %v554
        %v566 = vpack.c.bf16 %v557, %v556
        %v567 = vpack.c.bf16 %v559, %v558
        %v576 = vunpack.c.l.b16 %v560
        %v577 = vunpack.c.h.b16 %v560
        %v578 = vunpack.c.l.b16 %v561
        %v579 = vunpack.c.h.b16 %v561
        %v580 = vunpack.c.l.b16 %v562
        %v581 = vunpack.c.h.b16 %v562
        %v582 = vunpack.c.l.b16 %v563
        %v583 = vunpack.c.h.b16 %v563
        %v584 = vunpack.c.l.b16 %v564
        %v585 = vunpack.c.h.b16 %v564
        %v586 = vunpack.c.l.b16 %v565
        %v587 = vunpack.c.h.b16 %v565
        %v588 = vunpack.c.l.b16 %v566
        %v589 = vunpack.c.h.b16 %v566
        %v590 = vunpack.c.l.b16 %v567
        %v591 = vunpack.c.h.b16 %v567
        %v592 = vpack.c.b16 %v576, %v576
        %v593 = vpack.c.b16 %v577, %v577
        %v594 = vpack.c.b16 %v578, %v578
        %v595 = vpack.c.b16 %v579, %v579
        %v596 = vpack.c.b16 %v580, %v580
        %v597 = vpack.c.b16 %v581, %v581
        %v598 = vpack.c.b16 %v582, %v582
        %v599 = vpack.c.b16 %v583, %v583
        %v600 = vpack.c.b16 %v584, %v584
        %v601 = vpack.c.b16 %v585, %v585
        %v602 = vpack.c.b16 %v586, %v586
        %v603 = vpack.c.b16 %v587, %v587
        %v604 = vpack.c.b16 %v588, %v588
        %v605 = vpack.c.b16 %v589, %v589
        %v606 = vpack.c.b16 %v590, %v590
        %v607 = vpack.c.b16 %v591, %v591
        %624 = vst [vmem:[%s202] sm:$0xf] %v592
        %625 = vst [vmem:[%s202 + $0x4] sm:$0xf] %v593
        %626 = vst [vmem:[%s202 + $0x8] sm:$0xf] %v594
        %627 = vst [vmem:[%s202 + $0xc] sm:$0xf] %v595
        %628 = vst [vmem:[%s202 + $0x10] sm:$0xf] %v596
        %629 = vst [vmem:[%s202 + $0x14] sm:$0xf] %v597
        %630 = vst [vmem:[%s202 + $0x18] sm:$0xf] %v598
        %631 = vst [vmem:[%s202 + $0x1c] sm:$0xf] %v599
        %632 = vst [vmem:[%s202 + $0x20] sm:$0xf] %v600
        %633 = vst [vmem:[%s202 + $0x24] sm:$0xf] %v601
        %634 = vst [vmem:[%s202 + $0x28] sm:$0xf] %v602
        %635 = vst [vmem:[%s202 + $0x2c] sm:$0xf] %v603
        %636 = vst [vmem:[%s202 + $0x30] sm:$0xf] %v604
        %637 = vst [vmem:[%s202 + $0x34] sm:$0xf] %v605
        %638 = vst [vmem:[%s202 + $0x38] sm:$0xf] %v606
        %639 = vst [vmem:[%s202 + $0x3c] sm:$0xf] %v607
        %s640 = sand.u32 %s98, 1
        %s641 = scalar_lea.sflag [#allocation3], %s640
        %s642 = sand.u32 %s98, 1
        %s643 = smul.addr %s642, 128
        %s644 = scalar_lea.vmem [#allocation2], %s643
        %s645 = sand.u32 %s124, 1
        %s646 = scalar_lea.sflag [#allocation5], %s645
        %s647 = sand.u32 %s124, 1
        %s648 = smul.addr %s647, 64
        %s649 = scalar_lea.vmem [#allocation4], %s648
        // Predicated region
        $region33: #{tpu_custom_call.1} parent=31 // pred_check
          %p650 = pneg %p108
        $region34: #{tpu_custom_call.1} parent=31 // pred_check_branch
          %652 = sbr.rel (%p650) target = $region36
        $region35: #{tpu_custom_call.1} parent=31 // pred_region
          %s653 = smul.u32 16, %s22
          %s655 = ssub.s32 2048, 2048
          %656 = vsyncadd %s641, %s655
          %s657 = smul.addr %s653, 128
          %s658 = scalar_lea.hbm %s3, %s657
          %s659 = sshll.u32 %s644, 4
          %s660 = int_to_ptr.vmem [resolvable:$true] %s659
          %665 = dma.vmem_to_hbm [thread:$0]  %s660, 2048, %s658, %s641, 128, 128, 8
        $region36: #{tpu_custom_call.1} parent=31 // pred_fallthru
          _
        // Predicated region
        $region37: #{tpu_custom_call.1} parent=31 // pred_check
          %p666 = pneg %p134
        $region38: #{tpu_custom_call.1} parent=31 // pred_check_branch
          %668 = sbr.rel (%p666) target = $region40
        $region39: #{tpu_custom_call.1} parent=31 // pred_region
          %s669 = smul.u32 16, %s22
          %s671 = ssub.s32 1024, 1024
          %672 = vsyncadd %s646, %s671
          %s673 = smul.addr %s669, 64
          %s674 = scalar_lea.hbm %s4, %s673
          %s675 = sshll.u32 %s649, 4
          %s676 = int_to_ptr.vmem [resolvable:$true] %s675
          %681 = dma.vmem_to_hbm [thread:$0]  %s676, 1024, %s674, %s646, 64, 64, 4
        $region40: #{tpu_custom_call.1} parent=31 // pred_fallthru
          _
      $region32: #{tpu_custom_call.1} parent=5 // pred_fallthru
        _
      %p682 = scmp.le.s32.totalorder 2, %s17
      // Predicated region
      $region41: #{tpu_custom_call.1} parent=5 // pred_check
        %p683 = pneg %p682
      $region42: #{tpu_custom_call.1} parent=5 // pred_check_branch
        %685 = sbr.rel (%p683) target = $region44
      $region43: #{tpu_custom_call.1} parent=5 // pred_region
        %s686 = ssub.s32 %s17, 2
        // Predicated region
        $region45: #{tpu_custom_call.1} parent=43 // pred_check
          %p687 = pneg %p114
        $region46: #{tpu_custom_call.1} parent=43 // pred_check_branch
          %689 = sbr.rel (%p687) target = $region48
        $region47: #{tpu_custom_call.1} parent=43 // pred_region
          %s690 = sand.u32 %s99, 1
          %s691 = scalar_lea.sflag [#allocation3], %s690
          %s692 = sand.u32 %s99, 1
          %s693 = smul.addr %s692, 128
          %s694 = scalar_lea.vmem [#allocation2], %s693
          %695 = dma.done %s691, 2048
        $region48: #{tpu_custom_call.1} parent=43 // pred_fallthru
          _
        // Predicated region
        $region49: #{tpu_custom_call.1} parent=43 // pred_check
          %p696 = pneg %p140
        $region50: #{tpu_custom_call.1} parent=43 // pred_check_branch
          %698 = sbr.rel (%p696) target = $region52
        $region51: #{tpu_custom_call.1} parent=43 // pred_region
          %s699 = sand.u32 %s125, 1
          %s700 = scalar_lea.sflag [#allocation5], %s699
          %s701 = sand.u32 %s125, 1
          %s702 = smul.addr %s701, 64
          %s703 = scalar_lea.vmem [#allocation4], %s702
          %704 = dma.done %s700, 1024
        $region52: #{tpu_custom_call.1} parent=43 // pred_fallthru
          _
      $region44: #{tpu_custom_call.1} parent=5 // pred_fallthru
        _
    $region6: #{tpu_custom_call.1} parent=1 // loop_footer
      %s21 = sadd.s32 1, %s17
    $region7: #{tpu_custom_call.1} parent=1 // loop_footer_branch
      %16 = sbr.rel target = $region3
    $region8: #{tpu_custom_call.1} parent=1 // loop_exit
      _
    %705 = vsyncpa [#allocation3], 1
    %s706 = scalar_lea.sflag [#allocation3], 1
    %707 = vsyncpa %s706, 1
    %708 = vsyncpa [#allocation5], 1
    %s709 = scalar_lea.sflag [#allocation5], 1
    %710 = vsyncpa %s709, 1

</llo_original>
